<compile_context>
chip_gen: v7x
topology: tpu7x:2x2x1
jax: 0.10.0
libtpu: 0.0.40
codegen_flags: <defaults>
</compile_context>

<pallas_src>
import jax
import jax.numpy as jnp
from jax.experimental import pallas as pl
from jax.experimental.pallas import tpu as pltpu


OVERFLOW_AMOUNT = 0.3
SCALE_FACTOR = 1.0 + OVERFLOW_AMOUNT          # 1.3
OFFSET_TERM = -0.5 * OVERFLOW_AMOUNT          # -0.15

# sigmoid(x) = 0.5 * (1 + tanh(0.5 * x))  =>
#   out = OFFSET_TERM + SCALE_FACTOR * sigmoid(x)
#       = (OFFSET_TERM + 0.5*SCALE_FACTOR) + (0.5*SCALE_FACTOR) * tanh(0.5*x)
_TANH_BIAS = OFFSET_TERM + 0.5 * SCALE_FACTOR   # 0.5
_TANH_SCALE = 0.5 * SCALE_FACTOR                # 0.65

# Below this, pallas_call fixed cost + reshape glue dominates; XLA wins.
_SMALL_INPUT_ELEMS = 1 << 16
_LANE = 128


def _leaky_sigmoid_kernel(x_ref, o_ref):
    # Compute in f32 (free at the HBM roofline, better bf16 accuracy) and
    # round once on the store.
    x = x_ref[...].astype(jnp.float32)
    o_ref[...] = (_TANH_BIAS + _TANH_SCALE * jnp.tanh(0.5 * x)).astype(o_ref.dtype)


def _leaky_sigmoid_jax(x):
    return (OFFSET_TERM + SCALE_FACTOR * jax.nn.sigmoid(x)).astype(x.dtype)


def _chip_config():
    """Per-generation knobs: (block_bytes, vmem_limit_bytes, num_tensorcores)."""
    kind = ""
    try:
        kind = jax.devices()[0].device_kind.lower()
    except Exception:  # pragma: no cover - defensive (e.g. no devices yet)
        pass
    if "v7" in kind or "7x" in kind:
        # v7x: 2 TCs/chip, 64 MiB VMEM/TC, ~3.2 TB/s HBM -> bigger blocks and
        # an explicit raise of the 32 MiB default scoped-VMEM limit.
        return 8 << 20, 48 << 20, 2
    if "v6" in kind:
        # v6e: 1 TC, 128 MiB VMEM, ~1.3 TB/s HBM. 4 MiB blocks, default
        # scoped limit would already cover it but set explicitly anyway.
        return 4 << 20, 40 << 20, 1
    if "v5p" in kind or "v4" in kind:
        # Megacore chips: 2 TCs share the chip, plenty of VMEM.
        return 4 << 20, 40 << 20, 2
    # v5e / unknown: smallest default scoped VMEM (16 MiB) -> keep 2 MiB
    # blocks (8 MiB resident) and still set the limit explicitly.
    return 2 << 20, 32 << 20, 1


def _row_tile(rows, lane_width, itemsize, block_bytes, num_tc):
    """Sublane-aligned row-tile height for a (rows, lane_width) slab."""
    # Sub-32-bit dtypes pack along sublanes: round to the packed tile height.
    sub = 8 * max(1, 4 // itemsize)          # 8 f32, 16 bf16, 32 fp8/int8
    if rows <= sub:
        return int(rows)                      # block == full extent (allowed)
    max_tr = (rows // sub) * sub
    target = max(sub, (block_bytes // (lane_width * itemsize)) // sub * sub)
    tr = min(target, max_tr)
    if num_tc >= 2:
        # Best effort: even number of grid steps so ("parallel",) splits the
        # work evenly across the two TensorCores (no-op on 1-TC chips).
        steps = pl.cdiv(rows, tr)
        if steps % 2 == 1:
            tr_even = pl.cdiv(pl.cdiv(rows, steps + 1), sub) * sub
            tr_even = max(sub, min(tr_even, max_tr))
            if pl.cdiv(rows, tr_even) % 2 == 0:
                tr = tr_even
    return int(tr)


def leaky_sigmoid(x: jnp.ndarray, *, use_pallas=None, donate_input=False) -> jnp.ndarray:
    """LeakySigmoid: offset_term + scale_factor * sigmoid(x), elementwise.

    Accepts any shape (NCHW expected).  Call under jax.jit so the internal
    ravel/reshape stay metadata-only.
    """
    if not jnp.issubdtype(x.dtype, jnp.floating):
        raise ValueError(f"LeakySigmoid expects a floating dtype, got {x.dtype}")
    if x.dtype == jnp.float64:
        # TPU has no native f64 compute path; compute (and return) f32.
        x = x.astype(jnp.float32)

    orig_shape = x.shape
    n = x.size
    if n == 0:
        return x

    tail_n = n % _LANE
    if use_pallas is None:
        # Dispatch policy: small tensors and ragged totals go to the plain-JAX
        # fused elementwise -- it is already at the HBM roofline (read n +
        # write n) and avoids any pad / slice / stitch round-trips.  (In a
        # model graph, prefer letting XLA fuse this into the producer.)
        use_pallas = (n >= _SMALL_INPUT_ELEMS) and (tail_n == 0)
    if not use_pallas:
        return _leaky_sigmoid_jax(x)

    itemsize = jnp.dtype(x.dtype).itemsize
    flat = jnp.ravel(x)
    prefix_n = n - tail_n
    if prefix_n == 0:                 # forced-Pallas on a <128-element input
        return _leaky_sigmoid_jax(x)
    rows = prefix_n // _LANE

    block_bytes, vmem_limit, num_tc = _chip_config()
    tr = _row_tile(rows, _LANE, itemsize, block_bytes, num_tc)
    grid = (pl.cdiv(rows, tr),)       # ragged last block is masked by Pallas

    if tail_n:
        # Forced-Pallas ragged path: kernel on the 128-aligned prefix only.
        # TODO(synk): a fully in-kernel ragged tail (manual DMA on a pl.ANY
        # ref) would also remove the prefix slice/concat copies; the default
        # dispatch policy sidesteps this entirely via the plain-JAX path.
        slab = flat[:prefix_n].reshape(rows, _LANE)
    else:
        slab = flat.reshape(rows, _LANE)

    extra_kwargs = {}
    if donate_input:
        # Safe for this 1:1 elementwise mapping; only beneficial if the caller
        # actually donates x (otherwise XLA inserts a protective copy).
        extra_kwargs["input_output_aliases"] = {0: 0}

    out_slab = pl.pallas_call(
        _leaky_sigmoid_kernel,
        out_shape=jax.ShapeDtypeStruct((rows, _LANE), x.dtype),
        grid=grid,
        in_specs=[pl.BlockSpec((tr, _LANE), lambda i: (i, 0))],
        out_specs=pl.BlockSpec((tr, _LANE), lambda i: (i, 0)),
        compiler_params=pltpu.CompilerParams(
            dimension_semantics=("parallel",),
            vmem_limit_bytes=vmem_limit,
        ),
        cost_estimate=pl.CostEstimate(
            flops=3 * prefix_n,
            transcendentals=prefix_n,
            bytes_accessed=2 * prefix_n * itemsize,
        ),
        **extra_kwargs,
    )(slab)

    out_flat = out_slab.reshape(-1)
    if tail_n:
        out_flat = jnp.concatenate([out_flat, _leaky_sigmoid_jax(flat[prefix_n:])])
    return out_flat.reshape(orig_shape)


def _reference(x):
    return OFFSET_TERM + SCALE_FACTOR * jax.nn.sigmoid(x.astype(jnp.float32))


if __name__ == "__main__":
    key = jax.random.PRNGKey(0)
    k1, k2, k3 = jax.random.split(key, 3)

    fwd_pallas = jax.jit(lambda a: leaky_sigmoid(a, use_pallas=True))
    fwd_auto = jax.jit(leaky_sigmoid)

    # NCHW detector-head feature map: batch=2, channels=4, spatial=16x16.
    x = jax.random.normal(k1, (2, 4, 16, 16), dtype=jnp.float32)
    y_kernel = jax.block_until_ready(fwd_pallas(x))     # forced Pallas path
    y_auto = jax.block_until_ready(fwd_auto(x))         # auto (plain-JAX) path
    y_ref = _reference(x)
    assert y_kernel.shape == x.shape                     # SAFE_MODE-style check
    assert jnp.allclose(y_kernel, y_ref, atol=2e-6, rtol=1e-5)
    assert jnp.allclose(y_auto, y_ref, atol=2e-6, rtol=1e-5)

    # 1152 elems = 9 rows x 128: row count not a multiple of the sublane tile
    # -> exercises the masked ragged last grid block.
    x2 = jax.random.normal(k2, (2, 4, 16, 9), dtype=jnp.float32)
    y2 = jax.block_until_ready(fwd_pallas(x2))
    assert y2.shape == x2.shape
    assert jnp.allclose(y2, _reference(x2), atol=2e-6, rtol=1e-5)

    # 1155 elems (not a multiple of 128): forced-Pallas prefix + JAX-tail path.
    x3 = jax.random.normal(k3, (3, 5, 7, 11), dtype=jnp.float32)
    y3 = jax.block_until_ready(fwd_pallas(x3))
    assert y3.shape == x3.shape
    assert jnp.allclose(y3, _reference(x3), atol=2e-6, rtol=1e-5)

    # bf16 feature map: exercises the 16-sublane (packed dtype) row rounding.
    xb = x.astype(jnp.bfloat16)
    yb = jax.block_until_ready(fwd_pallas(xb))
    assert yb.dtype == jnp.bfloat16 and yb.shape == xb.shape
    assert jnp.allclose(yb.astype(jnp.float32), _reference(xb), atol=2e-2, rtol=2e-2)

    print("KERNEL_OK")
</pallas_src>

<mosaic_0001>
module attributes {stable_mosaic.version = 11 : i64} {
  func.func @_leaky_sigmoid_kernel(%arg0: i32, %arg1: memref<16x128xf32, #tpu.memory_space<vmem>>, %arg2: memref<16x128xf32, #tpu.memory_space<vmem>>) attributes {dimension_semantics = [#tpu.dimension_semantics<parallel>], iteration_bounds = array<i64: 1>, scalar_prefetch = 0 : i64, scratch_operands = 0 : i64, tpu.core_type = #tpu.core_type<tc>, window_params = [{transform_indices = @transform_0, window_bounds = array<i64: 16, 128>}, {transform_indices = @transform_1, window_bounds = array<i64: 16, 128>}]} {
    %c0 = arith.constant 0 : index
    %c0_0 = arith.constant 0 : index
    %0 = vector.load %arg1[%c0, %c0_0] : memref<16x128xf32, #tpu.memory_space<vmem>>, vector<16x128xf32>
    %cst = arith.constant 5.000000e-01 : f32
    %1 = vector.broadcast %cst : f32 to vector<16x128xf32>
    %2 = arith.mulf %1, %0 : vector<16x128xf32>
    %3 = math.tanh %2 : vector<16x128xf32>
    %cst_1 = arith.constant 6.500000e-01 : f32
    %4 = vector.broadcast %cst_1 : f32 to vector<16x128xf32>
    %5 = arith.mulf %4, %3 : vector<16x128xf32>
    %cst_2 = arith.constant 5.000000e-01 : f32
    %6 = vector.broadcast %cst_2 : f32 to vector<16x128xf32>
    %7 = arith.addf %6, %5 : vector<16x128xf32>
    %c0_3 = arith.constant 0 : index
    %c0_4 = arith.constant 0 : index
    %8 = vector.load %arg2[%c0_3, %c0_4] : memref<16x128xf32, #tpu.memory_space<vmem>>, vector<16x128xf32>
    tpu.vector_store %arg2[%c0_3, %c0_4], %7 {strides = array<i32>} : memref<16x128xf32, #tpu.memory_space<vmem>>, vector<16x128xf32>,
    return
  }
  func.func @transform_0(%arg0: i32) -> (i32, i32) {
    %c0_i32 = arith.constant 0 : i32
    %c0_i32_0 = arith.constant 0 : i32
    return %arg0, %c0_i32 : i32, i32
  }
  func.func @transform_1(%arg0: i32) -> (i32, i32) {
    %c0_i32 = arith.constant 0 : i32
    %c0_i32_0 = arith.constant 0 : i32
    return %arg0, %c0_i32 : i32, i32
  }
}

</mosaic_0001>

<llo_original>
// kernel: _lambda_.1
$region0: #{_lambda_.1}
  #allocation0 [shape = 'u32[]', space=smem, size = 0x4, offset = 0x4, fixed_abs, tag = 'smem constant byte address 0x4 - core index']
  #allocation1 [shape = 'u32[144,128]{1,0:T(1,128)}', space=vmem, size = 0x12000, scoped, tag = 'internal scratch']
  %s0 = inlined_call_operand.vmem [shape: f32[16,128], index: 0, kind: input, shape index: {}]
  %s1 = inlined_call_operand.vmem [shape: f32[16,128], index: 1, kind: output, shape index: {}]
  %s2 = sld [smem:[#allocation0]]
  $region14: #{_lambda_.1} parent=0
    _
  %s4 = ssub.s32 1, %s2
  %s5 = scalar_select 0, %s4, %s2
  // Predicated region
  $region2: #{_lambda_.1} parent=0 // pred_check
    _
  $region3: #{_lambda_.1} parent=0 // pred_check_branch
    %7 = sbr.rel (0) target = $region5
  $region4: #{_lambda_.1} parent=0 // pred_region
    _
  $region5: #{_lambda_.1} parent=0 // pred_fallthru
    _
  %v8 = vld [vmem:[%s0] sm:$0xff]
  %v9 = vld [vmem:[%s0 + $0x8] sm:$0xff]
  %v10 = vmul.f32 %v8, 0.5
  %v11 = vmul.f32 %v9, 0.5
  %v12 = vtanh.pop %v10
  %v13 = vtanh.pop %v11
  %v14 = vmul.f32 %v12, 0.65
  %v15 = vmul.f32 %v13, 0.65
  %v16 = vadd.f32 %v14, 0.5
  %v17 = vadd.f32 %v15, 0.5
  %18 = vst [vmem:[%s1] sm:$0xff] %v16
  %19 = vst [vmem:[%s1 + $0x8] sm:$0xff] %v17
  // Predicated region
  $region6: #{_lambda_.1} parent=0 // pred_check
    _
  $region7: #{_lambda_.1} parent=0 // pred_check_branch
    %21 = sbr.rel (0) target = $region9
  $region8: #{_lambda_.1} parent=0 // pred_region
    _
  $region9: #{_lambda_.1} parent=0 // pred_fallthru
    _
  // Predicated region
  $region10: #{_lambda_.1} parent=0 // pred_check
    _
  $region11: #{_lambda_.1} parent=0 // pred_check_branch
    %23 = sbr.rel (0) target = $region13
  $region12: #{_lambda_.1} parent=0 // pred_region
    _
  $region13: #{_lambda_.1} parent=0 // pred_fallthru
    _

</llo_original>
